<compile_context>
chip_gen: v5e
topology: v5e:2x2
jax: 0.10.0
libtpu: 0.0.40
codegen_flags: <defaults>
</compile_context>

<pallas_src>
import jax
import jax.numpy as jnp
from jax.experimental import pallas as pl
from jax.experimental.pallas import tpu as pltpu


F_PAD = 128            # lane-padded feature width (covers hidden=16 and cout=4)
DEF_TILE_M = 2048      # row-tile cap
DEF_TILE_K = 1024      # reduction-tile cap
SMALL_GRAPH_MAX_N = 1024   # fully-fused single-call path threshold (n_pad)


def _round_up(x, m):
    return ((x + m - 1) // m) * m


def _divisor_tile(n_pad, cap):
    """Largest multiple of 128 <= cap that divides n_pad (n_pad is a mult of 128)."""
    t = min(cap, n_pad)
    while n_pad % t:
        t -= 128
    return t


# ----------------------------------------------------------------------------
# Kernels
# ----------------------------------------------------------------------------
def _fused_small_kernel(a_ref, xs_ref, w1_ref, b1_ref, w2_ref, b2_ref,
                        dinv_ref, o_ref):
    """Whole forward pass in VMEM (small graphs, no grid)."""
    a = a_ref[...].astype(jnp.bfloat16)          # exact 0/1(+dups), cast in VMEM
    d = dinv_ref[...]                            # (n_pad, 1) f32
    # layer 1: h = relu(dinv * ((A+I) @ ((dinv*X) @ W1)) + b1)
    y1 = jnp.dot(xs_ref[...], w1_ref[...], preferred_element_type=jnp.float32)
    z1 = jnp.dot(a, y1.astype(jnp.bfloat16), preferred_element_type=jnp.float32)
    h = jnp.maximum(d * z1 + b1_ref[...], 0.0)
    # layer 2: out = dinv * ((A+I) @ (dinv * (h @ W2))) + b2
    y2 = d * jnp.dot(h.astype(jnp.bfloat16), w2_ref[...],
                     preferred_element_type=jnp.float32)
    z2 = jnp.dot(a, y2.astype(jnp.bfloat16), preferred_element_type=jnp.float32)
    o_ref[...] = d * z2 + b2_ref[...]


def _layer1_kernel(a_ref, xs_ref, w1_ref, b1_ref, w2_ref, dinv_ref,
                   o_ref, acc_ref):
    """acc += (A+I)_tile @ ((dinv*X)_tile @ W1); epilogue:
       o = dinv_i * (relu(dinv_i * acc + b1) @ W2)   (pre-scaled for layer 2)."""
    k = pl.program_id(1)

    @pl.when(k == 0)
    def _():
        acc_ref[...] = jnp.zeros_like(acc_ref)

    y = jnp.dot(xs_ref[...], w1_ref[...],
                preferred_element_type=jnp.float32).astype(jnp.bfloat16)
    acc_ref[...] += jnp.dot(a_ref[...].astype(jnp.bfloat16), y,
                            preferred_element_type=jnp.float32)

    @pl.when(k == pl.num_programs(1) - 1)
    def _():
        d = dinv_ref[...]                                        # (tile_m, 1)
        h = jnp.maximum(d * acc_ref[...] + b1_ref[...], 0.0)
        o_ref[...] = (d * jnp.dot(h.astype(jnp.bfloat16), w2_ref[...],
                                  preferred_element_type=jnp.float32)
                      ).astype(o_ref.dtype)


def _layer2_kernel(a_ref, y_ref, b2_ref, dinv_ref, o_ref, acc_ref):
    """acc += (A+I)_tile @ Y_tile; epilogue: o = dinv_i * acc + b2."""
    k = pl.program_id(1)

    @pl.when(k == 0)
    def _():
        acc_ref[...] = jnp.zeros_like(acc_ref)

    acc_ref[...] += jnp.dot(a_ref[...].astype(jnp.bfloat16), y_ref[...],
                            preferred_element_type=jnp.float32)

    @pl.when(k == pl.num_programs(1) - 1)
    def _():
        o_ref[...] = dinv_ref[...] * acc_ref[...] + b2_ref[...]


# ----------------------------------------------------------------------------
# Forward pass
# ----------------------------------------------------------------------------
def gnn_forward(x, edge_index, params, *,
                small_graph_max_n=SMALL_GRAPH_MAX_N,
                tile_m=None, tile_k=None):
    n, cin = x.shape
    w1, b1, w2, b2 = params["w1"], params["b1"], params["w2"], params["b2"]
    b1 = jnp.reshape(b1, (1, -1))
    b2 = jnp.reshape(b2, (1, -1))
    hidden = w1.shape[1]
    cout = w2.shape[1]
    assert hidden <= F_PAD and cout <= F_PAD

    n_pad = _round_up(max(n, 1), 128)

    # ---- degree / dinv straight from edge_index (O(E), no dense pass) -------
    # deg[i] = (# edges with dst == i) + 1 (self loop); matches PyG gcn_norm.
    dst = edge_index[1]
    deg = jnp.zeros((n,), jnp.float32).at[dst].add(1.0) + 1.0
    dinv = jnp.where(deg > 0, 1.0 / jnp.sqrt(deg), 0.0)
    dinv_p = jnp.zeros((n_pad, 1), jnp.float32).at[:n, 0].set(dinv)

    # ---- exact unnormalized (A + I), built directly padded & in int8 --------
    # TODO(synk): for large sparse graphs replace this dense O(N^2) scatter with
    # a gather-based sparse aggregation kernel (edge offsets via scalar prefetch).
    loop = jnp.arange(n, dtype=edge_index.dtype)
    src_all = jnp.concatenate([edge_index[0], loop])
    dst_all = jnp.concatenate([edge_index[1], loop])
    a_p = (jnp.zeros((n_pad, n_pad), jnp.int8)
           .at[dst_all, src_all].add(jnp.int8(1)))        # A[target, source]

    # ---- small, lane-padded operands ----------------------------------------
    xs = (dinv[:, None] * x).astype(jnp.bfloat16)          # fold right D^{-1/2}
    xs_p = jnp.zeros((n_pad, cin), jnp.bfloat16).at[:n, :].set(xs)
    w1_p = (jnp.zeros((cin, F_PAD), jnp.float32).at[:, :hidden].set(w1)
            ).astype(jnp.bfloat16)
    b1_p = jnp.zeros((1, F_PAD), jnp.float32).at[:, :hidden].set(b1)
    w2_p = (jnp.zeros((F_PAD, F_PAD), jnp.float32).at[:hidden, :cout].set(w2)
            ).astype(jnp.bfloat16)
    b2_p = jnp.zeros((1, F_PAD), jnp.float32).at[:, :cout].set(b2)

    # ---- fast path: whole graph fits VMEM, single fused pallas_call ---------
    if n_pad <= small_graph_max_n:
        out_p = pl.pallas_call(
            _fused_small_kernel,
            out_shape=jax.ShapeDtypeStruct((n_pad, F_PAD), jnp.float32),
        )(a_p, xs_p, w1_p, b1_p, w2_p, b2_p, dinv_p)
        return out_p[:n, :cout]

    # ---- tiled path ----------------------------------------------------------
    if tile_m is None:
        tile_m = _divisor_tile(n_pad, DEF_TILE_M)
    if tile_k is None:
        tile_k = _divisor_tile(n_pad, DEF_TILE_K)
    assert n_pad % tile_m == 0 and n_pad % tile_k == 0

    grid_rows = n_pad // tile_m
    grid_k = n_pad // tile_k

    cparams = pltpu.CompilerParams(
        dimension_semantics=("parallel", "arbitrary"),
        vmem_limit_bytes=32 * 1024 * 1024,
    )

    cost1 = pl.CostEstimate(
        flops=int(2 * n_pad * n_pad * F_PAD
                  + 2 * n_pad * cin * F_PAD * grid_rows
                  + 2 * n_pad * F_PAD * F_PAD),
        transcendentals=0,
        bytes_accessed=int(n_pad * n_pad                     # A (int8)
                           + grid_rows * n_pad * cin * 2     # xs re-reads
                           + n_pad * F_PAD * 2               # bf16 output
                           + n_pad * 4),                     # dinv
    )
    cost2 = pl.CostEstimate(
        flops=int(2 * n_pad * n_pad * F_PAD),
        transcendentals=0,
        bytes_accessed=int(n_pad * n_pad
                           + grid_rows * n_pad * F_PAD * 2
                           + n_pad * F_PAD * 4
                           + n_pad * 4),
    )

    # kernel 1: hW2s = dinv * (relu(dinv * ((A+I) @ ((dinv*X) @ W1)) + b1) @ W2)
    hw2s = pl.pallas_call(
        _layer1_kernel,
        out_shape=jax.ShapeDtypeStruct((n_pad, F_PAD), jnp.bfloat16),
        grid=(grid_rows, grid_k),
        in_specs=[
            pl.BlockSpec((tile_m, tile_k), lambda i, k: (i, k)),   # A (int8)
            pl.BlockSpec((tile_k, cin), lambda i, k: (k, 0)),      # dinv*X
            pl.BlockSpec((cin, F_PAD), lambda i, k: (0, 0)),       # W1
            pl.BlockSpec((1, F_PAD), lambda i, k: (0, 0)),         # b1
            pl.BlockSpec((F_PAD, F_PAD), lambda i, k: (0, 0)),     # W2
            pl.BlockSpec((tile_m, 1), lambda i, k: (i, 0)),        # dinv rows
        ],
        out_specs=pl.BlockSpec((tile_m, F_PAD), lambda i, k: (i, 0)),
        scratch_shapes=[pltpu.VMEM((tile_m, F_PAD), jnp.float32)],
        compiler_params=cparams,
        cost_estimate=cost1,
    )(a_p, xs_p, w1_p, b1_p, w2_p, dinv_p)

    # kernel 2: out = dinv * ((A+I) @ hW2s) + b2
    out_p = pl.pallas_call(
        _layer2_kernel,
        out_shape=jax.ShapeDtypeStruct((n_pad, F_PAD), jnp.float32),
        grid=(grid_rows, grid_k),
        in_specs=[
            pl.BlockSpec((tile_m, tile_k), lambda i, k: (i, k)),   # A (int8)
            pl.BlockSpec((tile_k, F_PAD), lambda i, k: (k, 0)),    # hW2s
            pl.BlockSpec((1, F_PAD), lambda i, k: (0, 0)),         # b2
            pl.BlockSpec((tile_m, 1), lambda i, k: (i, 0)),        # dinv rows
        ],
        out_specs=pl.BlockSpec((tile_m, F_PAD), lambda i, k: (i, 0)),
        scratch_shapes=[pltpu.VMEM((tile_m, F_PAD), jnp.float32)],
        compiler_params=cparams,
        cost_estimate=cost2,
    )(a_p, hw2s, b2_p, dinv_p)

    return out_p[:n, :cout]


# ----------------------------------------------------------------------------
# Params / reference
# ----------------------------------------------------------------------------
def init_params(key, in_channels, hidden, out_channels):
    k1, k2, k3, k4 = jax.random.split(key, 4)
    w1 = jax.random.normal(k1, (in_channels, hidden), jnp.float32) * (
        1.0 / jnp.sqrt(in_channels))
    b1 = jax.random.normal(k2, (1, hidden), jnp.float32) * 0.01
    w2 = jax.random.normal(k3, (hidden, out_channels), jnp.float32) * (
        1.0 / jnp.sqrt(hidden))
    b2 = jax.random.normal(k4, (1, out_channels), jnp.float32) * 0.01
    return {"w1": w1, "b1": b1, "w2": w2, "b2": b2}


def gcn_norm_adj(edge_index, num_nodes):
    """Dense f32 A_hat (reference only)."""
    src, dst = edge_index[0], edge_index[1]
    loop = jnp.arange(num_nodes, dtype=edge_index.dtype)
    src = jnp.concatenate([src, loop])
    dst = jnp.concatenate([dst, loop])
    a = jnp.zeros((num_nodes, num_nodes), jnp.float32).at[dst, src].add(1.0)
    deg = a.sum(axis=1)
    dinv = jnp.where(deg > 0, 1.0 / jnp.sqrt(deg), 0.0)
    return dinv[:, None] * a * dinv[None, :]


def _reference(x, edge_index, params):
    """Pure-JAX f32 reference of the same math."""
    a_hat = gcn_norm_adj(edge_index, x.shape[0])
    h = jnp.maximum(a_hat @ (x @ params["w1"]) + params["b1"], 0.0)
    return a_hat @ (h @ params["w2"]) + params["b2"]


if __name__ == "__main__":
    key = jax.random.PRNGKey(0)
    IN_CH, HIDDEN, OUT_CH = 8, 16, 4
    kx1, kx2, kp, ks, kd = jax.random.split(key, 5)
    params = init_params(kp, IN_CH, HIDDEN, OUT_CH)

    # --- test 1: small ring graph -> fully-fused single-call VMEM path -------
    N1 = 16
    x1 = jax.random.normal(kx1, (N1, IN_CH), jnp.float32)
    fwd = jnp.stack([jnp.arange(N1), (jnp.arange(N1) + 1) % N1])
    bwd = jnp.stack([(jnp.arange(N1) + 1) % N1, jnp.arange(N1)])
    ei1 = jnp.concatenate([fwd, bwd], axis=1).astype(jnp.int32)   # (2, 32)

    out1 = jax.block_until_ready(gnn_forward(x1, ei1, params))
    ref1 = _reference(x1, ei1, params)
    assert out1.shape == (N1, OUT_CH)
    assert jnp.allclose(out1, ref1, atol=3e-2, rtol=3e-2), (
        float(jnp.max(jnp.abs(out1 - ref1))))

    # --- test 2: larger random graph -> tiled (grid) path, multi-tile K loop -
    N2 = 300
    x2 = jax.random.normal(kx2, (N2, IN_CH), jnp.float32)
    src = jax.random.randint(ks, (1200,), 0, N2)
    dst = jax.random.randint(kd, (1200,), 0, N2)
    ei2 = jnp.stack([src, dst]).astype(jnp.int32)                 # (2, 1200)

    out2 = jax.block_until_ready(
        gnn_forward(x2, ei2, params, small_graph_max_n=0, tile_m=128, tile_k=128))
    ref2 = _reference(x2, ei2, params)
    assert out2.shape == (N2, OUT_CH)
    assert jnp.allclose(out2, ref2, atol=3e-2, rtol=3e-2), (
        float(jnp.max(jnp.abs(out2 - ref2))))

    print("KERNEL_OK")
</pallas_src>

<mosaic_0001>
module attributes {stable_mosaic.version = 11 : i64} {
  func.func @_fused_small_kernel(%arg0: memref<128x128xi8, #tpu.memory_space<vmem>>, %arg1: memref<128x8xbf16, #tpu.memory_space<vmem>>, %arg2: memref<8x128xbf16, #tpu.memory_space<vmem>>, %arg3: memref<1x128xf32, #tpu.memory_space<vmem>>, %arg4: memref<128x128xbf16, #tpu.memory_space<vmem>>, %arg5: memref<1x128xf32, #tpu.memory_space<vmem>>, %arg6: memref<128x1xf32, #tpu.memory_space<vmem>>, %arg7: memref<128x128xf32, #tpu.memory_space<vmem>>) attributes {dimension_semantics = [], scalar_prefetch = 0 : i64, scratch_operands = 0 : i64, tpu.core_type = #tpu.core_type<tc>} {
    %c0 = arith.constant 0 : index
    %c0_0 = arith.constant 0 : index
    %0 = vector.load %arg0[%c0, %c0_0] : memref<128x128xi8, #tpu.memory_space<vmem>>, vector<128x128xi8>
    %1 = arith.sitofp %0 : vector<128x128xi8> to vector<128x128xbf16>
    %c0_1 = arith.constant 0 : index
    %c0_2 = arith.constant 0 : index
    %2 = vector.load %arg6[%c0_1, %c0_2] : memref<128x1xf32, #tpu.memory_space<vmem>>, vector<128x1xf32>
    %c0_3 = arith.constant 0 : index
    %c0_4 = arith.constant 0 : index
    %3 = vector.load %arg1[%c0_3, %c0_4] : memref<128x8xbf16, #tpu.memory_space<vmem>>, vector<128x8xbf16>
    %c0_5 = arith.constant 0 : index
    %c0_6 = arith.constant 0 : index
    %4 = vector.load %arg2[%c0_5, %c0_6] : memref<8x128xbf16, #tpu.memory_space<vmem>>, vector<8x128xbf16>
    %cst = arith.constant dense<0.000000e+00> : vector<128x128xf32>
    %5 = tpu.matmul %3, %4, %cst {dimension_numbers = #tpu.dot_dimension_numbers<[1], [0], [0], [1], [0, 0, 1, 1], [], []>} : vector<128x8xbf16>, vector<8x128xbf16>, vector<128x128xf32> -> vector<128x128xf32>
    %6 = arith.truncf %5 : vector<128x128xf32> to vector<128x128xbf16>
    %cst_7 = arith.constant dense<0.000000e+00> : vector<128x128xf32>
    %7 = tpu.matmul %1, %6, %cst_7 {dimension_numbers = #tpu.dot_dimension_numbers<[1], [0], [0], [1], [0, 0, 1, 1], [], []>} : vector<128x128xbf16>, vector<128x128xbf16>, vector<128x128xf32> -> vector<128x128xf32>
    %8 = vector.broadcast %2 : vector<128x1xf32> to vector<128x128xf32>
    %9 = arith.mulf %8, %7 : vector<128x128xf32>
    %c0_8 = arith.constant 0 : index
    %c0_9 = arith.constant 0 : index
    %10 = vector.load %arg3[%c0_8, %c0_9] : memref<1x128xf32, #tpu.memory_space<vmem>>, vector<1x128xf32>
    %11 = vector.broadcast %10 : vector<1x128xf32> to vector<128x128xf32>
    %12 = arith.addf %9, %11 : vector<128x128xf32>
    %cst_10 = arith.constant 0.000000e+00 : f32
    %13 = vector.broadcast %cst_10 : f32 to vector<128x128xf32>
    %14 = arith.maximumf %12, %13 : vector<128x128xf32>
    %15 = arith.truncf %14 : vector<128x128xf32> to vector<128x128xbf16>
    %c0_11 = arith.constant 0 : index
    %c0_12 = arith.constant 0 : index
    %16 = vector.load %arg4[%c0_11, %c0_12] : memref<128x128xbf16, #tpu.memory_space<vmem>>, vector<128x128xbf16>
    %cst_13 = arith.constant dense<0.000000e+00> : vector<128x128xf32>
    %17 = tpu.matmul %15, %16, %cst_13 {dimension_numbers = #tpu.dot_dimension_numbers<[1], [0], [0], [1], [0, 0, 1, 1], [], []>} : vector<128x128xbf16>, vector<128x128xbf16>, vector<128x128xf32> -> vector<128x128xf32>
    %18 = vector.broadcast %2 : vector<128x1xf32> to vector<128x128xf32>
    %19 = arith.mulf %18, %17 : vector<128x128xf32>
    %20 = arith.truncf %19 : vector<128x128xf32> to vector<128x128xbf16>
    %cst_14 = arith.constant dense<0.000000e+00> : vector<128x128xf32>
    %21 = tpu.matmul %1, %20, %cst_14 {dimension_numbers = #tpu.dot_dimension_numbers<[1], [0], [0], [1], [0, 0, 1, 1], [], []>} : vector<128x128xbf16>, vector<128x128xbf16>, vector<128x128xf32> -> vector<128x128xf32>
    %22 = vector.broadcast %2 : vector<128x1xf32> to vector<128x128xf32>
    %23 = arith.mulf %22, %21 : vector<128x128xf32>
    %c0_15 = arith.constant 0 : index
    %c0_16 = arith.constant 0 : index
    %24 = vector.load %arg5[%c0_15, %c0_16] : memref<1x128xf32, #tpu.memory_space<vmem>>, vector<1x128xf32>
    %25 = vector.broadcast %24 : vector<1x128xf32> to vector<128x128xf32>
    %26 = arith.addf %23, %25 : vector<128x128xf32>
    %c0_17 = arith.constant 0 : index
    %c0_18 = arith.constant 0 : index
    %27 = vector.load %arg7[%c0_17, %c0_18] : memref<128x128xf32, #tpu.memory_space<vmem>>, vector<128x128xf32>
    tpu.vector_store %arg7[%c0_17, %c0_18], %26 {strides = array<i32>} : memref<128x128xf32, #tpu.memory_space<vmem>>, vector<128x128xf32>,
    return
  }
}

</mosaic_0001>

<llo_original>
// kernel: tpu_custom_call.1
$region0: #{tpu_custom_call.1}
  #allocation0 [shape = 'u32[]', space=smem, size = 0x4, offset = 0x4, fixed_abs, tag = 'smem constant byte address 0x4 - core index']
  #allocation1 [shape = 'u32[72,128]{1,0:T(1,128)}', space=vmem, size = 0x9000, scoped, tag = 'internal scratch']
  %s0 = inlined_call_operand.vmem [shape: s8[128,128], index: 0, kind: input, shape index: {}]
  %s1 = inlined_call_operand.vmem [shape: bf16[128,8], index: 1, kind: input, shape index: {}]
  %s2 = inlined_call_operand.vmem [shape: bf16[8,128], index: 2, kind: input, shape index: {}]
  %s3 = inlined_call_operand.vmem [shape: f32[1,128], index: 3, kind: input, shape index: {}]
  %s4 = inlined_call_operand.vmem [shape: bf16[128,128], index: 4, kind: input, shape index: {}]
  %s5 = inlined_call_operand.vmem [shape: f32[1,128], index: 5, kind: input, shape index: {}]
  %s6 = inlined_call_operand.vmem [shape: f32[128,1], index: 6, kind: input, shape index: {}]
  %s7 = inlined_call_operand.hbm [shape: f32[128,128], index: 7, kind: output, shape index: {}]
  %s8 = sld [smem:[#allocation0]]
  $region38: #{tpu_custom_call.1} parent=0
    _
  %s10 = ssub.s32 1, %s8
  %s11 = scalar_select 0, %s10, %s8
  $region1: #{tpu_custom_call.1} parent=0
    #allocation2 [shape = 'u8[65536]{0}', space=vmem, size = 0x10000, scoped, tag = 'output window, operand 0, single buffered']
    #allocation3 [shape = 's32[1]{0}', space=sflag, size = 0x4, scoped, tag = 'scoped memory for tpu_custom_call.1']
    %12 = vsyncpa [#allocation3], 0
    // Predicated region
    $region2: #{tpu_custom_call.1} parent=1 // pred_check
      _
    $region3: #{tpu_custom_call.1} parent=1 // pred_check_branch
      %14 = sbr.rel (0) target = $region5
    $region4: #{tpu_custom_call.1} parent=1 // pred_region
      _
    $region5: #{tpu_custom_call.1} parent=1 // pred_fallthru
      _
    // Predicated region
    $region6: #{tpu_custom_call.1} parent=1 // pred_check
      _
    $region7: #{tpu_custom_call.1} parent=1 // pred_check_branch
      %16 = sbr.rel (0) target = $region9
    $region8: #{tpu_custom_call.1} parent=1 // pred_region
      _
    $region9: #{tpu_custom_call.1} parent=1 // pred_fallthru
      _
    // Predicated region
    $region10: #{tpu_custom_call.1} parent=1 // pred_check
      _
    $region11: #{tpu_custom_call.1} parent=1 // pred_check_branch
      %18 = sbr.rel (0) target = $region13
    $region12: #{tpu_custom_call.1} parent=1 // pred_region
      _
    $region13: #{tpu_custom_call.1} parent=1 // pred_fallthru
      _
    // Predicated region
    $region14: #{tpu_custom_call.1} parent=1 // pred_check
      _
    $region15: #{tpu_custom_call.1} parent=1 // pred_check_branch
      %20 = sbr.rel (0) target = $region17
    $region16: #{tpu_custom_call.1} parent=1 // pred_region
      _
    $region17: #{tpu_custom_call.1} parent=1 // pred_fallthru
      _
    // Predicated region
    $region18: #{tpu_custom_call.1} parent=1 // pred_check
      _
    $region19: #{tpu_custom_call.1} parent=1 // pred_check_branch
      %22 = sbr.rel (0) target = $region21
    $region20: #{tpu_custom_call.1} parent=1 // pred_region
      _
    $region21: #{tpu_custom_call.1} parent=1 // pred_fallthru
      _
    // Predicated region
    $region22: #{tpu_custom_call.1} parent=1 // pred_check
      _
    $region23: #{tpu_custom_call.1} parent=1 // pred_check_branch
      %24 = sbr.rel (0) target = $region25
    $region24: #{tpu_custom_call.1} parent=1 // pred_region
      _
    $region25: #{tpu_custom_call.1} parent=1 // pred_fallthru
      _
    // Predicated region
    $region26: #{tpu_custom_call.1} parent=1 // pred_check
      _
    $region27: #{tpu_custom_call.1} parent=1 // pred_check_branch
      %26 = sbr.rel (0) target = $region29
    $region28: #{tpu_custom_call.1} parent=1 // pred_region
      _
    $region29: #{tpu_custom_call.1} parent=1 // pred_fallthru
      _
    %v28 = vld [vmem:[%s0] sm:$0xff]
    %v29 = vld [vmem:[%s0 + $0x8] sm:$0xff]
    %v30 = vld [vmem:[%s0 + $0x10] sm:$0xff]
    %v31 = vld [vmem:[%s0 + $0x18] sm:$0xff]
    %v32 = vunpack.c.0.s8 %v28
    %v33 = vunpack.c.1.s8 %v28
    %v34 = vunpack.c.2.s8 %v28
    %v35 = vunpack.c.3.s8 %v28
    %v36 = vunpack.c.0.s8 %v29
    %v37 = vunpack.c.1.s8 %v29
    %v38 = vunpack.c.2.s8 %v29
    %v39 = vunpack.c.3.s8 %v29
    %v40 = vunpack.c.0.s8 %v30
    %v41 = vunpack.c.1.s8 %v30
    %v42 = vunpack.c.2.s8 %v30
    %v43 = vunpack.c.3.s8 %v30
    %v44 = vunpack.c.0.s8 %v31
    %v45 = vunpack.c.1.s8 %v31
    %v46 = vunpack.c.2.s8 %v31
    %v47 = vunpack.c.3.s8 %v31
    %v48 = vcvt.s32.f32 %v32
    %v49 = vcvt.s32.f32 %v33
    %v50 = vcvt.s32.f32 %v34
    %v51 = vcvt.s32.f32 %v35
    %v52 = vcvt.s32.f32 %v36
    %v53 = vcvt.s32.f32 %v37
    %v54 = vcvt.s32.f32 %v38
    %v55 = vcvt.s32.f32 %v39
    %v56 = vcvt.s32.f32 %v40
    %v57 = vcvt.s32.f32 %v41
    %v58 = vcvt.s32.f32 %v42
    %v59 = vcvt.s32.f32 %v43
    %v60 = vcvt.s32.f32 %v44
    %v61 = vcvt.s32.f32 %v45
    %v62 = vcvt.s32.f32 %v46
    %v63 = vcvt.s32.f32 %v47
    %v64 = vpack.c.bf16 %v49, %v48
    %v65 = vpack.c.bf16 %v51, %v50
    %v66 = vpack.c.bf16 %v53, %v52
    %v67 = vpack.c.bf16 %v55, %v54
    %v68 = vpack.c.bf16 %v57, %v56
    %v69 = vpack.c.bf16 %v59, %v58
    %v70 = vpack.c.bf16 %v61, %v60
    %v71 = vpack.c.bf16 %v63, %v62
    %v72 = vld [vmem:[%s6] sm:$0xff]
    %v73 = vld [vmem:[%s6 + $0x8] sm:$0xff]
    %v74 = vld [vmem:[%s6 + $0x10] sm:$0xff]
    %v75 = vld [vmem:[%s6 + $0x18] sm:$0xff]
    %v76 = vld [vmem:[%s6 + $0x20] sm:$0xff]
    %v77 = vld [vmem:[%s6 + $0x28] sm:$0xff]
    %v78 = vld [vmem:[%s6 + $0x30] sm:$0xff]
    %v79 = vld [vmem:[%s6 + $0x38] sm:$0xff]
    %v80 = vld [vmem:[%s6 + $0x40] sm:$0xff]
    %v81 = vld [vmem:[%s6 + $0x48] sm:$0xff]
    %v82 = vld [vmem:[%s6 + $0x50] sm:$0xff]
    %v83 = vld [vmem:[%s6 + $0x58] sm:$0xff]
    %v84 = vld [vmem:[%s6 + $0x60] sm:$0xff]
    %v85 = vld [vmem:[%s6 + $0x68] sm:$0xff]
    %v86 = vld [vmem:[%s6 + $0x70] sm:$0xff]
    %v87 = vld [vmem:[%s6 + $0x78] sm:$0xff]
    %v88 = vld [vmem:[%s1] sm:$0xf]
    %v89 = vld [vmem:[%s1 + $0x4] sm:$0xf]
    %v90 = vld [vmem:[%s1 + $0x8] sm:$0xf]
    %v91 = vld [vmem:[%s1 + $0xc] sm:$0xf]
    %v92 = vld [vmem:[%s1 + $0x10] sm:$0xf]
    %v93 = vld [vmem:[%s1 + $0x14] sm:$0xf]
    %v94 = vld [vmem:[%s1 + $0x18] sm:$0xf]
    %v95 = vld [vmem:[%s1 + $0x1c] sm:$0xf]
    %v96 = vld [vmem:[%s1 + $0x20] sm:$0xf]
    %v97 = vld [vmem:[%s1 + $0x24] sm:$0xf]
    %v98 = vld [vmem:[%s1 + $0x28] sm:$0xf]
    %v99 = vld [vmem:[%s1 + $0x2c] sm:$0xf]
    %v100 = vld [vmem:[%s1 + $0x30] sm:$0xf]
    %v101 = vld [vmem:[%s1 + $0x34] sm:$0xf]
    %v102 = vld [vmem:[%s1 + $0x38] sm:$0xf]
    %v103 = vld [vmem:[%s1 + $0x3c] sm:$0xf]
    %v104 = vld [vmem:[%s2] sm:$0xf]
    %v121 = vunpack.c.l.b16 %v88
    %v122 = vunpack.c.l.b16 %v89
    %v123 = vunpack.c.l.b16 %v90
    %v124 = vunpack.c.l.b16 %v91
    %v125 = vunpack.c.l.b16 %v92
    %v126 = vunpack.c.l.b16 %v93
    %v127 = vunpack.c.l.b16 %v94
    %v128 = vunpack.c.l.b16 %v95
    %v129 = vunpack.c.l.b16 %v96
    %v130 = vunpack.c.l.b16 %v97
    %v131 = vunpack.c.l.b16 %v98
    %v132 = vunpack.c.l.b16 %v99
    %v133 = vunpack.c.l.b16 %v100
    %v134 = vunpack.c.l.b16 %v101
    %v135 = vunpack.c.l.b16 %v102
    %v136 = vunpack.c.l.b16 %v103
    %v137 = vpack.c.b16 %v122, %v121
    %v138 = vpack.c.b16 %v124, %v123
    %v139 = vpack.c.b16 %v126, %v125
    %v140 = vpack.c.b16 %v128, %v127
    %v141 = vpack.c.b16 %v130, %v129
    %v142 = vpack.c.b16 %v132, %v131
    %v143 = vpack.c.b16 %v134, %v133
    %v144 = vpack.c.b16 %v136, %v135
    %vm145 = vcmask 64512
    %v147 = vsel %vm145, %v137, 0
    %v150 = vsel %vm145, %v138, 0
    %v153 = vsel %vm145, %v139, 0
    %v156 = vsel %vm145, %v140, 0
    %v159 = vsel %vm145, %v141, 0
    %v162 = vsel %vm145, %v142, 0
    %v165 = vsel %vm145, %v143, 0
    %v168 = vsel %vm145, %v144, 0
    %vm170 = vcmask 1043456
    %v172 = vsel %vm170, %v104, 0
    %174 = vmatpush.bf16.msra.mxu0 0
    %175 = vmatpush.bf16.msra.mxu0 0
    %176 = vmatpush.bf16.msra.mxu0 0
    %177 = vmatpush.bf16.msra.mxu0 0
    %178 = vmatpush.bf16.msra.mxu0 0
    %179 = vmatpush.bf16.msra.mxu0 0
    %180 = vmatpush.bf16.msra.mxu0 0
    %181 = vmatpush.bf16.msra.mxu0 %v172
    %182 = vmatmul.bf16.gmra.mxu0 %v147
    %v183 = vpop.f32.mrf.mxu0
    %v184 = vadd.f32 0.0, %v183
    %v185 = vpop.f32.mrf.mxu0
    %v186 = vadd.f32 0.0, %v185
    %187 = vmatmul.bf16.gmra.mxu0 %v150
    %v188 = vpop.f32.mrf.mxu0
    %v189 = vadd.f32 0.0, %v188
    %v190 = vpop.f32.mrf.mxu0
    %v191 = vadd.f32 0.0, %v190
    %192 = vmatmul.bf16.gmra.mxu0 %v153
    %v193 = vpop.f32.mrf.mxu0
    %v194 = vadd.f32 0.0, %v193
    %v195 = vpop.f32.mrf.mxu0
    %v196 = vadd.f32 0.0, %v195
    %197 = vmatmul.bf16.gmra.mxu0 %v156
    %v198 = vpop.f32.mrf.mxu0
    %v199 = vadd.f32 0.0, %v198
    %v200 = vpop.f32.mrf.mxu0
    %v201 = vadd.f32 0.0, %v200
    %202 = vmatmul.bf16.gmra.mxu0 %v159
    %v203 = vpop.f32.mrf.mxu0
    %v204 = vadd.f32 0.0, %v203
    %v205 = vpop.f32.mrf.mxu0
    %v206 = vadd.f32 0.0, %v205
    %207 = vmatmul.bf16.gmra.mxu0 %v162
    %v208 = vpop.f32.mrf.mxu0
    %v209 = vadd.f32 0.0, %v208
    %v210 = vpop.f32.mrf.mxu0
    %v211 = vadd.f32 0.0, %v210
    %212 = vmatmul.bf16.gmra.mxu0 %v165
    %v213 = vpop.f32.mrf.mxu0
    %v214 = vadd.f32 0.0, %v213
    %v215 = vpop.f32.mrf.mxu0
    %v216 = vadd.f32 0.0, %v215
    %217 = vmatmul.bf16.gmra.mxu0 %v168
    %v218 = vpop.f32.mrf.mxu0
    %v219 = vadd.f32 0.0, %v218
    %v220 = vpop.f32.mrf.mxu0
    %v221 = vadd.f32 0.0, %v220
    %222 = vdwg.mxu0
    %v223 = vpack.c.bf16 %v186, %v184
    %v224 = vpack.c.bf16 %v191, %v189
    %v225 = vpack.c.bf16 %v196, %v194
    %v226 = vpack.c.bf16 %v201, %v199
    %v227 = vpack.c.bf16 %v206, %v204
    %v228 = vpack.c.bf16 %v211, %v209
    %v229 = vpack.c.bf16 %v216, %v214
    %v230 = vpack.c.bf16 %v221, %v219
    %231 = vmatpush.bf16.msra.mxu0 %v230
    %232 = vmatpush.bf16.msra.mxu0 %v229
    %233 = vmatpush.bf16.msra.mxu0 %v228
    %234 = vmatpush.bf16.msra.mxu0 %v227
    %235 = vmatpush.bf16.msra.mxu0 %v226
    %236 = vmatpush.bf16.msra.mxu0 %v225
    %237 = vmatpush.bf16.msra.mxu0 %v224
    %238 = vmatpush.bf16.msra.mxu0 %v223
    %239 = vmatmul.bf16.gmra.mxu0 %v64
    %v240 = vpop.f32.mrf.mxu0
    %v241 = vadd.f32 0.0, %v240
    %v242 = vpop.f32.mrf.mxu0
    %v243 = vadd.f32 0.0, %v242
    %244 = vmatmul.bf16.gmra.mxu0 %v65
    %v245 = vpop.f32.mrf.mxu0
    %v246 = vadd.f32 0.0, %v245
    %v247 = vpop.f32.mrf.mxu0
    %v248 = vadd.f32 0.0, %v247
    %249 = vmatmul.bf16.gmra.mxu0 %v66
    %v250 = vpop.f32.mrf.mxu0
    %v251 = vadd.f32 0.0, %v250
    %v252 = vpop.f32.mrf.mxu0
    %v253 = vadd.f32 0.0, %v252
    %254 = vmatmul.bf16.gmra.mxu0 %v67
    %v255 = vpop.f32.mrf.mxu0
    %v256 = vadd.f32 0.0, %v255
    %v257 = vpop.f32.mrf.mxu0
    %v258 = vadd.f32 0.0, %v257
    %259 = vmatmul.bf16.gmra.mxu0 %v68
    %v260 = vpop.f32.mrf.mxu0
    %v261 = vadd.f32 0.0, %v260
    %v262 = vpop.f32.mrf.mxu0
    %v263 = vadd.f32 0.0, %v262
    %264 = vmatmul.bf16.gmra.mxu0 %v69
    %v265 = vpop.f32.mrf.mxu0
    %v266 = vadd.f32 0.0, %v265
    %v267 = vpop.f32.mrf.mxu0
    %v268 = vadd.f32 0.0, %v267
    %269 = vmatmul.bf16.gmra.mxu0 %v70
    %v270 = vpop.f32.mrf.mxu0
    %v271 = vadd.f32 0.0, %v270
    %v272 = vpop.f32.mrf.mxu0
    %v273 = vadd.f32 0.0, %v272
    %274 = vmatmul.bf16.gmra.mxu0 %v71
    %v275 = vpop.f32.mrf.mxu0
    %v276 = vadd.f32 0.0, %v275
    %v277 = vpop.f32.mrf.mxu0
    %v278 = vadd.f32 0.0, %v277
    %279 = vdwg.mxu0
    %281 = vset.pattern.permute.xlu0 0
    %282 = vperm.xlu0 %281, %v72
    %v283 = vpop.permute.xlu0 %282
    %286 = vset.pattern.permute.xlu0 0
    %287 = vperm.xlu0 %286, %v73
    %v288 = vpop.permute.xlu0 %287
    %291 = vset.pattern.permute.xlu0 0
    %292 = vperm.xlu0 %291, %v74
    %v293 = vpop.permute.xlu0 %292
    %296 = vset.pattern.permute.xlu0 0
    %297 = vperm.xlu0 %296, %v75
    %v298 = vpop.permute.xlu0 %297
    %301 = vset.pattern.permute.xlu0 0
    %302 = vperm.xlu0 %301, %v76
    %v303 = vpop.permute.xlu0 %302
    %306 = vset.pattern.permute.xlu0 0
    %307 = vperm.xlu0 %306, %v77
    %v308 = vpop.permute.xlu0 %307
    %311 = vset.pattern.permute.xlu0 0
    %312 = vperm.xlu0 %311, %v78
    %v313 = vpop.permute.xlu0 %312
    %316 = vset.pattern.permute.xlu0 0
    %317 = vperm.xlu0 %316, %v79
    %v318 = vpop.permute.xlu0 %317
    %321 = vset.pattern.permute.xlu0 0
    %322 = vperm.xlu0 %321, %v80
    %v323 = vpop.permute.xlu0 %322
    %326 = vset.pattern.permute.xlu0 0
    %327 = vperm.xlu0 %326, %v81
    %v328 = vpop.permute.xlu0 %327
    %331 = vset.pattern.permute.xlu0 0
    %332 = vperm.xlu0 %331, %v82
    %v333 = vpop.permute.xlu0 %332
    %336 = vset.pattern.permute.xlu0 0
    %337 = vperm.xlu0 %336, %v83
    %v338 = vpop.permute.xlu0 %337
    %341 = vset.pattern.permute.xlu0 0
    %342 = vperm.xlu0 %341, %v84
    %v343 = vpop.permute.xlu0 %342
    %346 = vset.pattern.permute.xlu0 0
    %347 = vperm.xlu0 %346, %v85
    %v348 = vpop.permute.xlu0 %347
    %351 = vset.pattern.permute.xlu0 0
    %352 = vperm.xlu0 %351, %v86
    %v353 = vpop.permute.xlu0 %352
    %356 = vset.pattern.permute.xlu0 0
    %357 = vperm.xlu0 %356, %v87
    %v358 = vpop.permute.xlu0 %357
    %v360 = vmul.f32 %v283, %v241
    %v361 = vmul.f32 %v288, %v243
    %v362 = vmul.f32 %v293, %v246
    %v363 = vmul.f32 %v298, %v248
    %v364 = vmul.f32 %v303, %v251
    %v365 = vmul.f32 %v308, %v253
    %v366 = vmul.f32 %v313, %v256
    %v367 = vmul.f32 %v318, %v258
    %v368 = vmul.f32 %v323, %v261
    %v369 = vmul.f32 %v328, %v263
    %v370 = vmul.f32 %v333, %v266
    %v371 = vmul.f32 %v338, %v268
    %v372 = vmul.f32 %v343, %v271
    %v373 = vmul.f32 %v348, %v273
    %v374 = vmul.f32 %v353, %v276
    %v375 = vmul.f32 %v358, %v278
    %v376 = vld [vmem:[%s3] sm:$0x1]
    %v378 = vperm.slane %v376, 0
    %v380 = vadd.f32 %v360, %v378
    %v381 = vadd.f32 %v361, %v378
    %v382 = vadd.f32 %v362, %v378
    %v383 = vadd.f32 %v363, %v378
    %v384 = vadd.f32 %v364, %v378
    %v385 = vadd.f32 %v365, %v378
    %v386 = vadd.f32 %v366, %v378
    %v387 = vadd.f32 %v367, %v378
    %v388 = vadd.f32 %v368, %v378
    %v389 = vadd.f32 %v369, %v378
    %v390 = vadd.f32 %v370, %v378
    %v391 = vadd.f32 %v371, %v378
    %v392 = vadd.f32 %v372, %v378
    %v393 = vadd.f32 %v373, %v378
    %v394 = vadd.f32 %v374, %v378
    %v395 = vadd.f32 %v375, %v378
    %v396 = vmax.f32 %v380, 0.0
    %v397 = vmax.f32 %v381, 0.0
    %v398 = vmax.f32 %v382, 0.0
    %v399 = vmax.f32 %v383, 0.0
    %v400 = vmax.f32 %v384, 0.0
    %v401 = vmax.f32 %v385, 0.0
    %v402 = vmax.f32 %v386, 0.0
    %v403 = vmax.f32 %v387, 0.0
    %v404 = vmax.f32 %v388, 0.0
    %v405 = vmax.f32 %v389, 0.0
    %v406 = vmax.f32 %v390, 0.0
    %v407 = vmax.f32 %v391, 0.0
    %v408 = vmax.f32 %v392, 0.0
    %v409 = vmax.f32 %v393, 0.0
    %v410 = vmax.f32 %v394, 0.0
    %v411 = vmax.f32 %v395, 0.0
    %v412 = vpack.c.bf16 %v397, %v396
    %v413 = vpack.c.bf16 %v399, %v398
    %v414 = vpack.c.bf16 %v401, %v400
    %v415 = vpack.c.bf16 %v403, %v402
    %v416 = vpack.c.bf16 %v405, %v404
    %v417 = vpack.c.bf16 %v407, %v406
    %v418 = vpack.c.bf16 %v409, %v408
    %v419 = vpack.c.bf16 %v411, %v410
    %v420 = vld [vmem:[%s4] sm:$0xf]
    %v421 = vld [vmem:[%s4 + $0x4] sm:$0xf]
    %v422 = vld [vmem:[%s4 + $0x8] sm:$0xf]
    %v423 = vld [vmem:[%s4 + $0xc] sm:$0xf]
    %v424 = vld [vmem:[%s4 + $0x10] sm:$0xf]
    %v425 = vld [vmem:[%s4 + $0x14] sm:$0xf]
    %v426 = vld [vmem:[%s4 + $0x18] sm:$0xf]
    %v427 = vld [vmem:[%s4 + $0x1c] sm:$0xf]
    %v428 = vld [vmem:[%s4 + $0x20] sm:$0xf]
    %v429 = vld [vmem:[%s4 + $0x24] sm:$0xf]
    %v430 = vld [vmem:[%s4 + $0x28] sm:$0xf]
    %v431 = vld [vmem:[%s4 + $0x2c] sm:$0xf]
    %v432 = vld [vmem:[%s4 + $0x30] sm:$0xf]
    %v433 = vld [vmem:[%s4 + $0x34] sm:$0xf]
    %v434 = vld [vmem:[%s4 + $0x38] sm:$0xf]
    %v435 = vld [vmem:[%s4 + $0x3c] sm:$0xf]
    %v452 = vunpack.c.l.b16 %v420
    %v453 = vunpack.c.l.b16 %v421
    %v454 = vunpack.c.l.b16 %v422
    %v455 = vunpack.c.l.b16 %v423
    %v456 = vunpack.c.l.b16 %v424
    %v457 = vunpack.c.l.b16 %v425
    %v458 = vunpack.c.l.b16 %v426
    %v459 = vunpack.c.l.b16 %v427
    %v460 = vunpack.c.l.b16 %v428
    %v461 = vunpack.c.l.b16 %v429
    %v462 = vunpack.c.l.b16 %v430
    %v463 = vunpack.c.l.b16 %v431
    %v464 = vunpack.c.l.b16 %v432
    %v465 = vunpack.c.l.b16 %v433
    %v466 = vunpack.c.l.b16 %v434
    %v467 = vunpack.c.l.b16 %v435
    %v468 = vpack.c.b16 %v453, %v452
    %v469 = vpack.c.b16 %v455, %v454
    %v470 = vpack.c.b16 %v457, %v456
    %v471 = vpack.c.b16 %v459, %v458
    %v472 = vpack.c.b16 %v461, %v460
    %v473 = vpack.c.b16 %v463, %v462
    %v474 = vpack.c.b16 %v465, %v464
    %v475 = vpack.c.b16 %v467, %v466
    %484 = vmatpush.bf16.msra.mxu0 %v475
    %485 = vmatpush.bf16.msra.mxu0 %v474
    %486 = vmatpush.bf16.msra.mxu0 %v473
    %487 = vmatpush.bf16.msra.mxu0 %v472
    %488 = vmatpush.bf16.msra.mxu0 %v471
    %489 = vmatpush.bf16.msra.mxu0 %v470
    %490 = vmatpush.bf16.msra.mxu0 %v469
    %491 = vmatpush.bf16.msra.mxu0 %v468
    %492 = vmatmul.bf16.gmra.mxu0 %v412
    %v493 = vpop.f32.mrf.mxu0
    %v494 = vadd.f32 0.0, %v493
    %v495 = vpop.f32.mrf.mxu0
    %v496 = vadd.f32 0.0, %v495
    %497 = vmatmul.bf16.gmra.mxu0 %v413
    %v498 = vpop.f32.mrf.mxu0
    %v499 = vadd.f32 0.0, %v498
    %v500 = vpop.f32.mrf.mxu0
    %v501 = vadd.f32 0.0, %v500
    %502 = vmatmul.bf16.gmra.mxu0 %v414
    %v503 = vpop.f32.mrf.mxu0
    %v504 = vadd.f32 0.0, %v503
    %v505 = vpop.f32.mrf.mxu0
    %v506 = vadd.f32 0.0, %v505
    %507 = vmatmul.bf16.gmra.mxu0 %v415
    %v508 = vpop.f32.mrf.mxu0
    %v509 = vadd.f32 0.0, %v508
    %v510 = vpop.f32.mrf.mxu0
    %v511 = vadd.f32 0.0, %v510
    %512 = vmatmul.bf16.gmra.mxu0 %v416
    %v513 = vpop.f32.mrf.mxu0
    %v514 = vadd.f32 0.0, %v513
    %v515 = vpop.f32.mrf.mxu0
    %v516 = vadd.f32 0.0, %v515
    %517 = vmatmul.bf16.gmra.mxu0 %v417
    %v518 = vpop.f32.mrf.mxu0
    %v519 = vadd.f32 0.0, %v518
    %v520 = vpop.f32.mrf.mxu0
    %v521 = vadd.f32 0.0, %v520
    %522 = vmatmul.bf16.gmra.mxu0 %v418
    %v523 = vpop.f32.mrf.mxu0
    %v524 = vadd.f32 0.0, %v523
    %v525 = vpop.f32.mrf.mxu0
    %v526 = vadd.f32 0.0, %v525
    %527 = vmatmul.bf16.gmra.mxu0 %v419
    %v528 = vpop.f32.mrf.mxu0
    %v529 = vadd.f32 0.0, %v528
    %v530 = vpop.f32.mrf.mxu0
    %v531 = vadd.f32 0.0, %v530
    %532 = vdwg.mxu0
    %v533 = vmul.f32 %v283, %v494
    %v534 = vmul.f32 %v288, %v496
    %v535 = vmul.f32 %v293, %v499
    %v536 = vmul.f32 %v298, %v501
    %v537 = vmul.f32 %v303, %v504
    %v538 = vmul.f32 %v308, %v506
    %v539 = vmul.f32 %v313, %v509
    %v540 = vmul.f32 %v318, %v511
    %v541 = vmul.f32 %v323, %v514
    %v542 = vmul.f32 %v328, %v516
    %v543 = vmul.f32 %v333, %v519
    %v544 = vmul.f32 %v338, %v521
    %v545 = vmul.f32 %v343, %v524
    %v546 = vmul.f32 %v348, %v526
    %v547 = vmul.f32 %v353, %v529
    %v548 = vmul.f32 %v358, %v531
    %v549 = vpack.c.bf16 %v534, %v533
    %v550 = vpack.c.bf16 %v536, %v535
    %v551 = vpack.c.bf16 %v538, %v537
    %v552 = vpack.c.bf16 %v540, %v539
    %v553 = vpack.c.bf16 %v542, %v541
    %v554 = vpack.c.bf16 %v544, %v543
    %v555 = vpack.c.bf16 %v546, %v545
    %v556 = vpack.c.bf16 %v548, %v547
    %557 = vmatpush.bf16.msra.mxu0 %v556
    %558 = vmatpush.bf16.msra.mxu0 %v555
    %559 = vmatpush.bf16.msra.mxu0 %v554
    %560 = vmatpush.bf16.msra.mxu0 %v553
    %561 = vmatpush.bf16.msra.mxu0 %v552
    %562 = vmatpush.bf16.msra.mxu0 %v551
    %563 = vmatpush.bf16.msra.mxu0 %v550
    %564 = vmatpush.bf16.msra.mxu0 %v549
    %565 = vmatmul.bf16.gmra.mxu0 %v64
    %v566 = vpop.f32.mrf.mxu0
    %v567 = vadd.f32 0.0, %v566
    %v568 = vpop.f32.mrf.mxu0
    %v569 = vadd.f32 0.0, %v568
    %570 = vmatmul.bf16.gmra.mxu0 %v65
    %v571 = vpop.f32.mrf.mxu0
    %v572 = vadd.f32 0.0, %v571
    %v573 = vpop.f32.mrf.mxu0
    %v574 = vadd.f32 0.0, %v573
    %575 = vmatmul.bf16.gmra.mxu0 %v66
    %v576 = vpop.f32.mrf.mxu0
    %v577 = vadd.f32 0.0, %v576
    %v578 = vpop.f32.mrf.mxu0
    %v579 = vadd.f32 0.0, %v578
    %580 = vmatmul.bf16.gmra.mxu0 %v67
    %v581 = vpop.f32.mrf.mxu0
    %v582 = vadd.f32 0.0, %v581
    %v583 = vpop.f32.mrf.mxu0
    %v584 = vadd.f32 0.0, %v583
    %585 = vmatmul.bf16.gmra.mxu0 %v68
    %v586 = vpop.f32.mrf.mxu0
    %v587 = vadd.f32 0.0, %v586
    %v588 = vpop.f32.mrf.mxu0
    %v589 = vadd.f32 0.0, %v588
    %590 = vmatmul.bf16.gmra.mxu0 %v69
    %v591 = vpop.f32.mrf.mxu0
    %v592 = vadd.f32 0.0, %v591
    %v593 = vpop.f32.mrf.mxu0
    %v594 = vadd.f32 0.0, %v593
    %595 = vmatmul.bf16.gmra.mxu0 %v70
    %v596 = vpop.f32.mrf.mxu0
    %v597 = vadd.f32 0.0, %v596
    %v598 = vpop.f32.mrf.mxu0
    %v599 = vadd.f32 0.0, %v598
    %600 = vmatmul.bf16.gmra.mxu0 %v71
    %v601 = vpop.f32.mrf.mxu0
    %v602 = vadd.f32 0.0, %v601
    %v603 = vpop.f32.mrf.mxu0
    %v604 = vadd.f32 0.0, %v603
    %605 = vdwg.mxu0
    %v606 = vmul.f32 %v283, %v567
    %v607 = vmul.f32 %v288, %v569
    %v608 = vmul.f32 %v293, %v572
    %v609 = vmul.f32 %v298, %v574
    %v610 = vmul.f32 %v303, %v577
    %v611 = vmul.f32 %v308, %v579
    %v612 = vmul.f32 %v313, %v582
    %v613 = vmul.f32 %v318, %v584
    %v614 = vmul.f32 %v323, %v587
    %v615 = vmul.f32 %v328, %v589
    %v616 = vmul.f32 %v333, %v592
    %v617 = vmul.f32 %v338, %v594
    %v618 = vmul.f32 %v343, %v597
    %v619 = vmul.f32 %v348, %v599
    %v620 = vmul.f32 %v353, %v602
    %v621 = vmul.f32 %v358, %v604
    %v622 = vld [vmem:[%s5] sm:$0x1]
    %v624 = vperm.slane %v622, 0
    %v626 = vadd.f32 %v606, %v624
    %v627 = vadd.f32 %v607, %v624
    %v628 = vadd.f32 %v608, %v624
    %v629 = vadd.f32 %v609, %v624
    %v630 = vadd.f32 %v610, %v624
    %v631 = vadd.f32 %v611, %v624
    %v632 = vadd.f32 %v612, %v624
    %v633 = vadd.f32 %v613, %v624
    %v634 = vadd.f32 %v614, %v624
    %v635 = vadd.f32 %v615, %v624
    %v636 = vadd.f32 %v616, %v624
    %v637 = vadd.f32 %v617, %v624
    %v638 = vadd.f32 %v618, %v624
    %v639 = vadd.f32 %v619, %v624
    %v640 = vadd.f32 %v620, %v624
    %v641 = vadd.f32 %v621, %v624
    %642 = vst [vmem:[#allocation2] sm:$0xff] %v626
    %643 = vst [vmem:[#allocation2 + $0x8] sm:$0xff] %v627
    %644 = vst [vmem:[#allocation2 + $0x10] sm:$0xff] %v628
    %645 = vst [vmem:[#allocation2 + $0x18] sm:$0xff] %v629
    %646 = vst [vmem:[#allocation2 + $0x20] sm:$0xff] %v630
    %647 = vst [vmem:[#allocation2 + $0x28] sm:$0xff] %v631
    %648 = vst [vmem:[#allocation2 + $0x30] sm:$0xff] %v632
    %649 = vst [vmem:[#allocation2 + $0x38] sm:$0xff] %v633
    %650 = vst [vmem:[#allocation2 + $0x40] sm:$0xff] %v634
    %651 = vst [vmem:[#allocation2 + $0x48] sm:$0xff] %v635
    %652 = vst [vmem:[#allocation2 + $0x50] sm:$0xff] %v636
    %653 = vst [vmem:[#allocation2 + $0x58] sm:$0xff] %v637
    %654 = vst [vmem:[#allocation2 + $0x60] sm:$0xff] %v638
    %655 = vst [vmem:[#allocation2 + $0x68] sm:$0xff] %v639
    %656 = vst [vmem:[#allocation2 + $0x70] sm:$0xff] %v640
    %657 = vst [vmem:[#allocation2 + $0x78] sm:$0xff] %v641
    // Predicated region
    $region30: #{tpu_custom_call.1} parent=1 // pred_check
      _
    $region31: #{tpu_custom_call.1} parent=1 // pred_check_branch
      %659 = sbr.rel (0) target = $region33
    $region32: #{tpu_custom_call.1} parent=1 // pred_region
      %661 = vsyncadd [#allocation3], 0
      %s662 = sshll.u32 [#allocation2], 4
      %s663 = int_to_ptr.vmem [resolvable:$true] %s662
      %s664 = sshll.u32 %s7, 4
      %s665 = int_to_ptr.hbm [resolvable:$true] %s664
      %670 = dma.vmem_to_hbm [thread:$0]  %s663, 2048, %s665, [#allocation3], 128, 128, 8
    $region33: #{tpu_custom_call.1} parent=1 // pred_fallthru
      _
    // Predicated region
    $region34: #{tpu_custom_call.1} parent=1 // pred_check
      _
    $region35: #{tpu_custom_call.1} parent=1 // pred_check_branch
      %672 = sbr.rel (0) target = $region37
    $region36: #{tpu_custom_call.1} parent=1 // pred_region
      %674 = dma.done [#allocation3], 2048
    $region37: #{tpu_custom_call.1} parent=1 // pred_fallthru
      _
    %675 = vsyncpa [#allocation3], 1

</llo_original>
